<compile_context>
chip_gen: v7x
topology: tpu7x:2x2x1
jax: 0.10.0
libtpu: 0.0.40
codegen_flags: <defaults>
</compile_context>

<pallas_src>
import functools

import jax
import jax.numpy as jnp
from jax.experimental import pallas as pl
from jax.experimental.pallas import tpu as pltpu


def _round_up(n, m):
    return ((n + m - 1) // m) * m


def _pad2(a, rows, cols):
    r, c = a.shape
    return jnp.pad(a, ((0, rows - r), (0, cols - c)))


def dqn_mlp_kernel(x_ref, w1_ref, b1_ref, w2_ref, b2_ref, w3_ref, b3_ref, y_ref):
    # Biases loaded (and broadcast) once at kernel entry; everything after the
    # MXU dots is f32 (VPU slack under the dots makes this essentially free).
    b1 = b1_ref[...]
    b2 = b2_ref[...]
    b3 = b3_ref[...]

    x = x_ref[...]
    z1 = jnp.dot(x, w1_ref[...], preferred_element_type=jnp.float32) + b1
    a1 = jnp.maximum(z1, 0.0).astype(w2_ref.dtype)

    z2 = jnp.dot(a1, w2_ref[...], preferred_element_type=jnp.float32) + b2
    a2 = jnp.maximum(z2, 0.0).astype(w3_ref.dtype)

    y = jnp.dot(a2, w3_ref[...], preferred_element_type=jnp.float32) + b3
    y_ref[...] = y.astype(y_ref.dtype)


def prepare_params(w1, b1, w2, b2, w3, b3, compute_dtype=jnp.bfloat16):
    """Pad hidden/action lane dims to multiples of 128 and cast MXU operands.

    Call once at init; the returned (padded) params are what dqn_forward takes,
    so no per-call pad/convert ops are emitted. Zero padding keeps the math
    exact (padded columns/rows contribute 0 through the matmuls).
    """
    S, H = w1.shape
    A = w3.shape[1]
    H_p = _round_up(H, 128)
    A_p = _round_up(A, 128)

    w1_p = _pad2(w1, S, H_p).astype(compute_dtype)     # keep K = S unpadded
    w2_p = _pad2(w2, H_p, H_p).astype(compute_dtype)
    w3_p = _pad2(w3, H_p, A_p).astype(compute_dtype)
    b1_p = _pad2(b1.reshape(1, -1), 1, H_p).astype(jnp.float32)
    b2_p = _pad2(b2.reshape(1, -1), 1, H_p).astype(jnp.float32)
    b3_p = _pad2(b3.reshape(1, -1), 1, A_p).astype(jnp.float32)
    return w1_p, b1_p, w2_p, b2_p, w3_p, b3_p


@functools.partial(jax.jit, static_argnames=("action_dim", "block_b"))
def dqn_forward(x, w1_p, b1_p, w2_p, b2_p, w3_p, b3_p, *, action_dim,
                block_b=512):
    """Forward pass. Params must come from prepare_params (already padded)."""
    B, S = x.shape
    assert w1_p.shape[0] == S, "x feature dim must match w1 in_features"

    # Batch tiling: round block_b to a multiple of 8 (sublane constraint),
    # collapse to a single grid step whenever B fits in one tile.
    block_b = _round_up(max(int(block_b), 8), 8)
    tb = min(block_b, _round_up(B, 8))
    B_p = _round_up(B, tb)
    n_blocks = B_p // tb

    # Only the batch-scaled tensor is touched per call: pad rows (no feature
    # padding) and cast to the MXU compute dtype.
    x_p = _pad2(x, B_p, S).astype(w1_p.dtype)

    H_p = w1_p.shape[1]
    A_p = w3_p.shape[1]

    # Weights/biases use a constant index_map -> DMA'd into VMEM once and
    # resident across grid steps; only x/y tiles stream (double-buffered).
    resident = lambda shape: pl.BlockSpec(shape, lambda i: (0, 0))

    y_p = pl.pallas_call(
        dqn_mlp_kernel,
        out_shape=jax.ShapeDtypeStruct((B_p, A_p), jnp.float32),
        grid=(n_blocks,),
        in_specs=[
            pl.BlockSpec((tb, S), lambda i: (i, 0)),     # x streams over batch
            resident((S, H_p)), resident((1, H_p)),      # w1, b1
            resident((H_p, H_p)), resident((1, H_p)),    # w2, b2
            resident((H_p, A_p)), resident((1, A_p)),    # w3, b3
        ],
        out_specs=pl.BlockSpec((tb, A_p), lambda i: (i, 0)),
        compiler_params=pltpu.CompilerParams(
            # Batch blocks are independent; on v7x this lets the two TCs split
            # the grid when n_blocks > 1 (no-op on v5e/v6e and for n_blocks=1).
            dimension_semantics=("parallel",),
            # Headroom below v7x's 64 MiB physical VMEM; actual footprint at
            # these sizes is well under 2 MiB.
            # TODO(synk): add a K-tiling grid axis if hidden_dim grows past a
            # few thousand so w2 need not stay fully resident.
            vmem_limit_bytes=32 << 20,
        ),
    )(x_p, w1_p, b1_p, w2_p, b2_p, w3_p, b3_p)

    return y_p[:B, :action_dim]


def init_linear(key, fan_in, fan_out):
    # Mimic PyTorch nn.Linear default init: U(-1/sqrt(fan_in), 1/sqrt(fan_in)).
    kw, kb = jax.random.split(key)
    bound = 1.0 / jnp.sqrt(jnp.float32(fan_in))
    w = jax.random.uniform(kw, (fan_in, fan_out), jnp.float32, -bound, bound)
    b = jax.random.uniform(kb, (1, fan_out), jnp.float32, -bound, bound)
    return w, b


if __name__ == "__main__":
    batch, state_dim, hidden_dim, action_dim = 200, 16, 32, 4

    key = jax.random.PRNGKey(0)
    kx, k1, k2, k3 = jax.random.split(key, 4)

    x = jax.random.normal(kx, (batch, state_dim), jnp.float32)
    w1, b1 = init_linear(k1, state_dim, hidden_dim)
    w2, b2 = init_linear(k2, hidden_dim, hidden_dim)
    w3, b3 = init_linear(k3, hidden_dim, action_dim)

    # Pure-JAX f32 reference of the same forward pass.
    a1 = jnp.maximum(x @ w1 + b1, 0.0)
    a2 = jnp.maximum(a1 @ w2 + b2, 0.0)
    y_ref = a2 @ w3 + b3

    # bf16 MXU path (default: f32 accumulation, f32 bias/ReLU), padded once.
    params_bf16 = prepare_params(w1, b1, w2, b2, w3, b3,
                                 compute_dtype=jnp.bfloat16)
    y_bf16 = dqn_forward(x, *params_bf16, action_dim=action_dim)
    y_bf16 = jax.block_until_ready(y_bf16)
    assert y_bf16.shape == (batch, action_dim)
    assert jnp.allclose(y_bf16, y_ref, atol=5e-2, rtol=5e-2)

    # f32 compute path (exact).
    params_f32 = prepare_params(w1, b1, w2, b2, w3, b3,
                                compute_dtype=jnp.float32)
    y_f32 = dqn_forward(x, *params_f32, action_dim=action_dim)
    y_f32 = jax.block_until_ready(y_f32)
    assert y_f32.shape == (batch, action_dim)
    assert jnp.allclose(y_f32, y_ref, atol=1e-5, rtol=1e-5)

    print("KERNEL_OK")
</pallas_src>

<mosaic_0001>
module attributes {stable_mosaic.version = 11 : i64} {
  func.func @dqn_mlp_kernel(%arg0: i32, %arg1: memref<200x16xbf16, #tpu.memory_space<vmem>>, %arg2: memref<16x128xbf16, #tpu.memory_space<vmem>>, %arg3: memref<1x128xf32, #tpu.memory_space<vmem>>, %arg4: memref<128x128xbf16, #tpu.memory_space<vmem>>, %arg5: memref<1x128xf32, #tpu.memory_space<vmem>>, %arg6: memref<128x128xbf16, #tpu.memory_space<vmem>>, %arg7: memref<1x128xf32, #tpu.memory_space<vmem>>, %arg8: memref<200x128xf32, #tpu.memory_space<vmem>>) attributes {dimension_semantics = [#tpu.dimension_semantics<parallel>], iteration_bounds = array<i64: 1>, scalar_prefetch = 0 : i64, scratch_operands = 0 : i64, tpu.core_type = #tpu.core_type<tc>, window_params = [{transform_indices = @transform_0, window_bounds = array<i64: 200, 16>}, {pipeline_mode = #tpu.pipeline_mode<synchronous>, transform_indices = @transform_1, window_bounds = array<i64: 16, 128>}, {pipeline_mode = #tpu.pipeline_mode<synchronous>, transform_indices = @transform_2, window_bounds = array<i64: 1, 128>}, {pipeline_mode = #tpu.pipeline_mode<synchronous>, transform_indices = @transform_3, window_bounds = array<i64: 128, 128>}, {pipeline_mode = #tpu.pipeline_mode<synchronous>, transform_indices = @transform_4, window_bounds = array<i64: 1, 128>}, {pipeline_mode = #tpu.pipeline_mode<synchronous>, transform_indices = @transform_5, window_bounds = array<i64: 128, 128>}, {pipeline_mode = #tpu.pipeline_mode<synchronous>, transform_indices = @transform_6, window_bounds = array<i64: 1, 128>}, {transform_indices = @transform_7, window_bounds = array<i64: 200, 128>}]} {
    %c0 = arith.constant 0 : index
    %c0_0 = arith.constant 0 : index
    %0 = vector.load %arg3[%c0, %c0_0] : memref<1x128xf32, #tpu.memory_space<vmem>>, vector<1x128xf32>
    %c0_1 = arith.constant 0 : index
    %c0_2 = arith.constant 0 : index
    %1 = vector.load %arg5[%c0_1, %c0_2] : memref<1x128xf32, #tpu.memory_space<vmem>>, vector<1x128xf32>
    %c0_3 = arith.constant 0 : index
    %c0_4 = arith.constant 0 : index
    %2 = vector.load %arg7[%c0_3, %c0_4] : memref<1x128xf32, #tpu.memory_space<vmem>>, vector<1x128xf32>
    %c0_5 = arith.constant 0 : index
    %c0_6 = arith.constant 0 : index
    %3 = vector.load %arg1[%c0_5, %c0_6] : memref<200x16xbf16, #tpu.memory_space<vmem>>, vector<200x16xbf16>
    %c0_7 = arith.constant 0 : index
    %c0_8 = arith.constant 0 : index
    %4 = vector.load %arg2[%c0_7, %c0_8] : memref<16x128xbf16, #tpu.memory_space<vmem>>, vector<16x128xbf16>
    %cst = arith.constant dense<0.000000e+00> : vector<200x128xf32>
    %5 = tpu.matmul %3, %4, %cst {dimension_numbers = #tpu.dot_dimension_numbers<[1], [0], [0], [1], [0, 0, 1, 1], [], []>} : vector<200x16xbf16>, vector<16x128xbf16>, vector<200x128xf32> -> vector<200x128xf32>
    %6 = vector.broadcast %0 : vector<1x128xf32> to vector<200x128xf32>
    %7 = arith.addf %5, %6 : vector<200x128xf32>
    %cst_9 = arith.constant 0.000000e+00 : f32
    %8 = vector.broadcast %cst_9 : f32 to vector<200x128xf32>
    %9 = arith.maximumf %7, %8 : vector<200x128xf32>
    %10 = arith.truncf %9 : vector<200x128xf32> to vector<200x128xbf16>
    %c0_10 = arith.constant 0 : index
    %c0_11 = arith.constant 0 : index
    %11 = vector.load %arg4[%c0_10, %c0_11] : memref<128x128xbf16, #tpu.memory_space<vmem>>, vector<128x128xbf16>
    %cst_12 = arith.constant dense<0.000000e+00> : vector<200x128xf32>
    %12 = tpu.matmul %10, %11, %cst_12 {dimension_numbers = #tpu.dot_dimension_numbers<[1], [0], [0], [1], [0, 0, 1, 1], [], []>} : vector<200x128xbf16>, vector<128x128xbf16>, vector<200x128xf32> -> vector<200x128xf32>
    %13 = vector.broadcast %1 : vector<1x128xf32> to vector<200x128xf32>
    %14 = arith.addf %12, %13 : vector<200x128xf32>
    %cst_13 = arith.constant 0.000000e+00 : f32
    %15 = vector.broadcast %cst_13 : f32 to vector<200x128xf32>
    %16 = arith.maximumf %14, %15 : vector<200x128xf32>
    %17 = arith.truncf %16 : vector<200x128xf32> to vector<200x128xbf16>
    %c0_14 = arith.constant 0 : index
    %c0_15 = arith.constant 0 : index
    %18 = vector.load %arg6[%c0_14, %c0_15] : memref<128x128xbf16, #tpu.memory_space<vmem>>, vector<128x128xbf16>
    %cst_16 = arith.constant dense<0.000000e+00> : vector<200x128xf32>
    %19 = tpu.matmul %17, %18, %cst_16 {dimension_numbers = #tpu.dot_dimension_numbers<[1], [0], [0], [1], [0, 0, 1, 1], [], []>} : vector<200x128xbf16>, vector<128x128xbf16>, vector<200x128xf32> -> vector<200x128xf32>
    %20 = vector.broadcast %2 : vector<1x128xf32> to vector<200x128xf32>
    %21 = arith.addf %19, %20 : vector<200x128xf32>
    %c0_17 = arith.constant 0 : index
    %c0_18 = arith.constant 0 : index
    %22 = vector.load %arg8[%c0_17, %c0_18] : memref<200x128xf32, #tpu.memory_space<vmem>>, vector<200x128xf32>
    tpu.vector_store %arg8[%c0_17, %c0_18], %21 {strides = array<i32>} : memref<200x128xf32, #tpu.memory_space<vmem>>, vector<200x128xf32>,
    return
  }
  func.func @transform_0(%arg0: i32) -> (i32, i32) {
    %c0_i32 = arith.constant 0 : i32
    %c0_i32_0 = arith.constant 0 : i32
    return %arg0, %c0_i32 : i32, i32
  }
  func.func @transform_1(%arg0: i32) -> (i32, i32) {
    %c0_i32 = arith.constant 0 : i32
    %c0_i32_0 = arith.constant 0 : i32
    %c0_i32_1 = arith.constant 0 : i32
    return %c0_i32, %c0_i32_0 : i32, i32
  }
  func.func @transform_2(%arg0: i32) -> (i32, i32) {
    %c0_i32 = arith.constant 0 : i32
    %c0_i32_0 = arith.constant 0 : i32
    %c0_i32_1 = arith.constant 0 : i32
    return %c0_i32, %c0_i32_0 : i32, i32
  }
  func.func @transform_3(%arg0: i32) -> (i32, i32) {
    %c0_i32 = arith.constant 0 : i32
    %c0_i32_0 = arith.constant 0 : i32
    %c0_i32_1 = arith.constant 0 : i32
    return %c0_i32, %c0_i32_0 : i32, i32
  }
  func.func @transform_4(%arg0: i32) -> (i32, i32) {
    %c0_i32 = arith.constant 0 : i32
    %c0_i32_0 = arith.constant 0 : i32
    %c0_i32_1 = arith.constant 0 : i32
    return %c0_i32, %c0_i32_0 : i32, i32
  }
  func.func @transform_5(%arg0: i32) -> (i32, i32) {
    %c0_i32 = arith.constant 0 : i32
    %c0_i32_0 = arith.constant 0 : i32
    %c0_i32_1 = arith.constant 0 : i32
    return %c0_i32, %c0_i32_0 : i32, i32
  }
  func.func @transform_6(%arg0: i32) -> (i32, i32) {
    %c0_i32 = arith.constant 0 : i32
    %c0_i32_0 = arith.constant 0 : i32
    %c0_i32_1 = arith.constant 0 : i32
    return %c0_i32, %c0_i32_0 : i32, i32
  }
  func.func @transform_7(%arg0: i32) -> (i32, i32) {
    %c0_i32 = arith.constant 0 : i32
    %c0_i32_0 = arith.constant 0 : i32
    return %arg0, %c0_i32 : i32, i32
  }
}

</mosaic_0001>

<llo_original>
// kernel: dqn_forward.1
$region0: #{dqn_forward.1}
  #allocation0 [shape = 'u32[]', space=smem, size = 0x4, offset = 0x4, fixed_abs, tag = 'smem constant byte address 0x4 - core index']
  #allocation1 [shape = 'u32[144,128]{1,0:T(1,128)}', space=vmem, size = 0x12000, scoped, tag = 'internal scratch']
  %s0 = inlined_call_operand.vmem [shape: bf16[200,16], index: 0, kind: input, shape index: {}]
  %s1 = inlined_call_operand.vmem [shape: bf16[16,128], index: 1, kind: input, shape index: {}]
  %s2 = inlined_call_operand.vmem [shape: f32[1,128], index: 2, kind: input, shape index: {}]
  %s3 = inlined_call_operand.vmem [shape: bf16[128,128], index: 3, kind: input, shape index: {}]
  %s4 = inlined_call_operand.vmem [shape: f32[1,128], index: 4, kind: input, shape index: {}]
  %s5 = inlined_call_operand.vmem [shape: bf16[128,128], index: 5, kind: input, shape index: {}]
  %s6 = inlined_call_operand.vmem [shape: f32[1,128], index: 6, kind: input, shape index: {}]
  %s7 = inlined_call_operand.vmem [shape: f32[200,128], index: 7, kind: output, shape index: {}]
  %s8 = sld [smem:[#allocation0]]
  $region38: #{dqn_forward.1} parent=0
    _
  %s10 = ssub.s32 1, %s8
  %s11 = scalar_select 0, %s10, %s8
  // Predicated region
  $region2: #{dqn_forward.1} parent=0 // pred_check
    _
  $region3: #{dqn_forward.1} parent=0 // pred_check_branch
    %13 = sbr.rel (0) target = $region5
  $region4: #{dqn_forward.1} parent=0 // pred_region
    _
  $region5: #{dqn_forward.1} parent=0 // pred_fallthru
    _
  // Predicated region
  $region6: #{dqn_forward.1} parent=0 // pred_check
    _
  $region7: #{dqn_forward.1} parent=0 // pred_check_branch
    %15 = sbr.rel (0) target = $region9
  $region8: #{dqn_forward.1} parent=0 // pred_region
    _
  $region9: #{dqn_forward.1} parent=0 // pred_fallthru
    _
  // Predicated region
  $region10: #{dqn_forward.1} parent=0 // pred_check
    _
  $region11: #{dqn_forward.1} parent=0 // pred_check_branch
    %17 = sbr.rel (0) target = $region13
  $region12: #{dqn_forward.1} parent=0 // pred_region
    _
  $region13: #{dqn_forward.1} parent=0 // pred_fallthru
    _
  // Predicated region
  $region14: #{dqn_forward.1} parent=0 // pred_check
    _
  $region15: #{dqn_forward.1} parent=0 // pred_check_branch
    %19 = sbr.rel (0) target = $region17
  $region16: #{dqn_forward.1} parent=0 // pred_region
    _
  $region17: #{dqn_forward.1} parent=0 // pred_fallthru
    _
  // Predicated region
  $region18: #{dqn_forward.1} parent=0 // pred_check
    _
  $region19: #{dqn_forward.1} parent=0 // pred_check_branch
    %21 = sbr.rel (0) target = $region21
  $region20: #{dqn_forward.1} parent=0 // pred_region
    _
  $region21: #{dqn_forward.1} parent=0 // pred_fallthru
    _
  // Predicated region
  $region22: #{dqn_forward.1} parent=0 // pred_check
    _
  $region23: #{dqn_forward.1} parent=0 // pred_check_branch
    %23 = sbr.rel (0) target = $region25
  $region24: #{dqn_forward.1} parent=0 // pred_region
    _
  $region25: #{dqn_forward.1} parent=0 // pred_fallthru
    _
  // Predicated region
  $region26: #{dqn_forward.1} parent=0 // pred_check
    _
  $region27: #{dqn_forward.1} parent=0 // pred_check_branch
    %25 = sbr.rel (0) target = $region29
  $region28: #{dqn_forward.1} parent=0 // pred_region
    _
  $region29: #{dqn_forward.1} parent=0 // pred_fallthru
    _
  %v27 = vld [vmem:[%s2] sm:$0x1]
  %v28 = vld [vmem:[%s4] sm:$0x1]
  %v29 = vld [vmem:[%s6] sm:$0x1]
  %v30 = vld [vmem:[%s0] sm:$0xf]
  %v31 = vld [vmem:[%s0 + $0x4] sm:$0xf]
  %v32 = vld [vmem:[%s0 + $0x8] sm:$0xf]
  %v33 = vld [vmem:[%s0 + $0xc] sm:$0xf]
  %v34 = vld [vmem:[%s0 + $0x10] sm:$0xf]
  %v35 = vld [vmem:[%s0 + $0x14] sm:$0xf]
  %v36 = vld [vmem:[%s0 + $0x18] sm:$0xf]
  %v37 = vld [vmem:[%s0 + $0x1c] sm:$0xf]
  %v38 = vld [vmem:[%s0 + $0x20] sm:$0xf]
  %v39 = vld [vmem:[%s0 + $0x24] sm:$0xf]
  %v40 = vld [vmem:[%s0 + $0x28] sm:$0xf]
  %v41 = vld [vmem:[%s0 + $0x2c] sm:$0xf]
  %v42 = vld [vmem:[%s0 + $0x30] sm:$0xf]
  %v43 = vld [vmem:[%s0 + $0x34] sm:$0xf]
  %v44 = vld [vmem:[%s0 + $0x38] sm:$0xf]
  %v45 = vld [vmem:[%s0 + $0x3c] sm:$0xf]
  %v46 = vld [vmem:[%s0 + $0x40] sm:$0xf]
  %v47 = vld [vmem:[%s0 + $0x44] sm:$0xf]
  %v48 = vld [vmem:[%s0 + $0x48] sm:$0xf]
  %v49 = vld [vmem:[%s0 + $0x4c] sm:$0xf]
  %v50 = vld [vmem:[%s0 + $0x50] sm:$0xf]
  %v51 = vld [vmem:[%s0 + $0x54] sm:$0xf]
  %v52 = vld [vmem:[%s0 + $0x58] sm:$0xf]
  %v53 = vld [vmem:[%s0 + $0x5c] sm:$0xf]
  %v54 = vld [vmem:[%s0 + $0x60] sm:$0xf]
  %v55 = vld [vmem:[%s1] sm:$0xf]
  %v56 = vld [vmem:[%s1 + $0x4] sm:$0xf]
  %v58 = vlaneseq
  %v59 = vshrl.u32 %v58, 7
  %v60 = vsub.s32 0, %v59
  %v61 = vrot.slane %v27, %v60
  %v88 = vunpack.c.l.b16 %v30
  %v89 = vunpack.c.l.b16 %v31
  %v90 = vunpack.c.l.b16 %v32
  %v91 = vunpack.c.l.b16 %v33
  %v92 = vunpack.c.l.b16 %v34
  %v93 = vunpack.c.l.b16 %v35
  %v94 = vunpack.c.l.b16 %v36
  %v95 = vunpack.c.l.b16 %v37
  %v96 = vunpack.c.l.b16 %v38
  %v97 = vunpack.c.l.b16 %v39
  %v98 = vunpack.c.l.b16 %v40
  %v99 = vunpack.c.l.b16 %v41
  %v100 = vunpack.c.l.b16 %v42
  %v101 = vunpack.c.l.b16 %v43
  %v102 = vunpack.c.l.b16 %v44
  %v103 = vunpack.c.l.b16 %v45
  %v104 = vunpack.c.l.b16 %v46
  %v105 = vunpack.c.l.b16 %v47
  %v106 = vunpack.c.l.b16 %v48
  %v107 = vunpack.c.l.b16 %v49
  %v108 = vunpack.c.l.b16 %v50
  %v109 = vunpack.c.l.b16 %v51
  %v110 = vunpack.c.l.b16 %v52
  %v111 = vunpack.c.l.b16 %v53
  %v112 = vunpack.c.l.b16 %v54
  %v113 = vpack.c.b16 %v89, %v88
  %v114 = vpack.c.b16 %v91, %v90
  %v115 = vpack.c.b16 %v93, %v92
  %v116 = vpack.c.b16 %v95, %v94
  %v117 = vpack.c.b16 %v97, %v96
  %v118 = vpack.c.b16 %v99, %v98
  %v119 = vpack.c.b16 %v101, %v100
  %v120 = vpack.c.b16 %v103, %v102
  %v121 = vpack.c.b16 %v105, %v104
  %v122 = vpack.c.b16 %v107, %v106
  %v123 = vpack.c.b16 %v109, %v108
  %v124 = vpack.c.b16 %v111, %v110
  %v125 = vpack.c.b16 %v112, %v112
  %v128 = vunpack.c.l.b16 %v55
  %v129 = vunpack.c.l.b16 %v56
  %v130 = vpack.c.b16 %v129, %v128
  %vm132 = vcmask 130048
  %v134 = vsel %vm132, %v113, 0
  %v137 = vsel %vm132, %v114, 0
  %v140 = vsel %vm132, %v115, 0
  %v143 = vsel %vm132, %v116, 0
  %v146 = vsel %vm132, %v117, 0
  %v149 = vsel %vm132, %v118, 0
  %v152 = vsel %vm132, %v119, 0
  %v155 = vsel %vm132, %v120, 0
  %v158 = vsel %vm132, %v121, 0
  %v161 = vsel %vm132, %v122, 0
  %v164 = vsel %vm132, %v123, 0
  %v167 = vsel %vm132, %v124, 0
  %v170 = vsel %vm132, %v125, 0
  %172 = vmatprep.subr.bf16.mxu0 0
  %173 = vmatpush1.bf16.msra.mxu0 %v130
  %174 = vmatprep.subr.bf16.mxu0 0
  %175 = vmatpush1.bf16.msra.mxu0 0
  %176 = vmatprep.subr.bf16.mxu0 0
  %177 = vmatpush1.bf16.msra.mxu0 0
  %178 = vmatprep.subr.bf16.mxu0 0
  %179 = vmatpush1.bf16.msra.mxu0 0
  %180 = vmatprep.subr.bf16.mxu0 0
  %181 = vmatpush1.bf16.msra.mxu0 0
  %182 = vmatprep.subr.bf16.mxu0 0
  %183 = vmatpush1.bf16.msra.mxu0 0
  %184 = vmatprep.subr.bf16.mxu0 0
  %185 = vmatpush1.bf16.msra.mxu0 0
  %186 = vmatprep.subr.bf16.mxu0 0
  %187 = vmatpush1.bf16.msra.mxu0 0
  %188 = vmatprep.subr.bf16.mxu0 0
  %189 = vmatpush1.bf16.msra.mxu0 0
  %190 = vmatprep.subr.bf16.mxu0 0
  %191 = vmatpush1.bf16.msra.mxu0 0
  %192 = vmatprep.subr.bf16.mxu0 0
  %193 = vmatpush1.bf16.msra.mxu0 0
  %194 = vmatprep.subr.bf16.mxu0 0
  %195 = vmatpush1.bf16.msra.mxu0 0
  %196 = vmatprep.subr.bf16.mxu0 0
  %197 = vmatpush1.bf16.msra.mxu0 0
  %198 = vmatprep.subr.bf16.mxu0 0
  %199 = vmatpush1.bf16.msra.mxu0 0
  %200 = vmatprep.subr.bf16.mxu0 0
  %201 = vmatpush1.bf16.msra.mxu0 0
  %202 = vmatprep.subr.bf16.mxu0 0
  %203 = vmatpush1.bf16.msra.mxu0 0
  %204 = vmatprep.mubr.bf16.mxu0 0
  %205 = vmatmul.mubr.bf16.gmra.mrb[0].mxu0 %v134
  %v206 = vpop.f32.mrb[0].mxu0
  %v207 = vadd.f32 %v61, %v206
  %v208 = vpop.f32.mrb[0].mxu0
  %v209 = vpop.f32.mrb[0].mxu0
  %v210 = vadd.f32 %v61, %v209
  %v211 = vpop.f32.mrb[0].mxu0
  %212 = vmatprep.mubr.bf16.mxu0 0
  %213 = vmatmul.mubr.bf16.gmra.mrb[0].mxu0 %v137
  %v214 = vpop.f32.mrb[0].mxu0
  %v215 = vadd.f32 %v61, %v214
  %v216 = vpop.f32.mrb[0].mxu0
  %v217 = vpop.f32.mrb[0].mxu0
  %v218 = vadd.f32 %v61, %v217
  %v219 = vpop.f32.mrb[0].mxu0
  %220 = vmatprep.mubr.bf16.mxu0 0
  %221 = vmatmul.mubr.bf16.gmra.mrb[0].mxu0 %v140
  %v222 = vpop.f32.mrb[0].mxu0
  %v223 = vadd.f32 %v61, %v222
  %v224 = vpop.f32.mrb[0].mxu0
  %v225 = vpop.f32.mrb[0].mxu0
  %v226 = vadd.f32 %v61, %v225
  %v227 = vpop.f32.mrb[0].mxu0
  %228 = vmatprep.mubr.bf16.mxu0 0
  %229 = vmatmul.mubr.bf16.gmra.mrb[0].mxu0 %v143
  %v230 = vpop.f32.mrb[0].mxu0
  %v231 = vadd.f32 %v61, %v230
  %v232 = vpop.f32.mrb[0].mxu0
  %v233 = vpop.f32.mrb[0].mxu0
  %v234 = vadd.f32 %v61, %v233
  %v235 = vpop.f32.mrb[0].mxu0
  %236 = vmatprep.mubr.bf16.mxu0 0
  %237 = vmatmul.mubr.bf16.gmra.mrb[0].mxu0 %v146
  %v238 = vpop.f32.mrb[0].mxu0
  %v239 = vadd.f32 %v61, %v238
  %v240 = vpop.f32.mrb[0].mxu0
  %v241 = vpop.f32.mrb[0].mxu0
  %v242 = vadd.f32 %v61, %v241
  %v243 = vpop.f32.mrb[0].mxu0
  %244 = vmatprep.mubr.bf16.mxu0 0
  %245 = vmatmul.mubr.bf16.gmra.mrb[0].mxu0 %v149
  %v246 = vpop.f32.mrb[0].mxu0
  %v247 = vadd.f32 %v61, %v246
  %v248 = vpop.f32.mrb[0].mxu0
  %v249 = vpop.f32.mrb[0].mxu0
  %v250 = vadd.f32 %v61, %v249
  %v251 = vpop.f32.mrb[0].mxu0
  %252 = vmatprep.mubr.bf16.mxu0 0
  %253 = vmatmul.mubr.bf16.gmra.mrb[0].mxu0 %v152
  %v254 = vpop.f32.mrb[0].mxu0
  %v255 = vadd.f32 %v61, %v254
  %v256 = vpop.f32.mrb[0].mxu0
  %v257 = vpop.f32.mrb[0].mxu0
  %v258 = vadd.f32 %v61, %v257
  %v259 = vpop.f32.mrb[0].mxu0
  %260 = vmatprep.mubr.bf16.mxu0 0
  %261 = vmatmul.mubr.bf16.gmra.mrb[0].mxu0 %v155
  %v262 = vpop.f32.mrb[0].mxu0
  %v263 = vadd.f32 %v61, %v262
  %v264 = vpop.f32.mrb[0].mxu0
  %v265 = vpop.f32.mrb[0].mxu0
  %v266 = vadd.f32 %v61, %v265
  %v267 = vpop.f32.mrb[0].mxu0
  %268 = vmatprep.mubr.bf16.mxu0 0
  %269 = vmatmul.mubr.bf16.gmra.mrb[0].mxu0 %v158
  %v270 = vpop.f32.mrb[0].mxu0
  %v271 = vadd.f32 %v61, %v270
  %v272 = vpop.f32.mrb[0].mxu0
  %v273 = vpop.f32.mrb[0].mxu0
  %v274 = vadd.f32 %v61, %v273
  %v275 = vpop.f32.mrb[0].mxu0
  %276 = vmatprep.mubr.bf16.mxu0 0
  %277 = vmatmul.mubr.bf16.gmra.mrb[0].mxu0 %v161
  %v278 = vpop.f32.mrb[0].mxu0
  %v279 = vadd.f32 %v61, %v278
  %v280 = vpop.f32.mrb[0].mxu0
  %v281 = vpop.f32.mrb[0].mxu0
  %v282 = vadd.f32 %v61, %v281
  %v283 = vpop.f32.mrb[0].mxu0
  %284 = vmatprep.mubr.bf16.mxu0 0
  %285 = vmatmul.mubr.bf16.gmra.mrb[0].mxu0 %v164
  %v286 = vpop.f32.mrb[0].mxu0
  %v287 = vadd.f32 %v61, %v286
  %v288 = vpop.f32.mrb[0].mxu0
  %v289 = vpop.f32.mrb[0].mxu0
  %v290 = vadd.f32 %v61, %v289
  %v291 = vpop.f32.mrb[0].mxu0
  %292 = vmatprep.mubr.bf16.mxu0 0
  %293 = vmatmul.mubr.bf16.gmra.mrb[0].mxu0 %v167
  %v294 = vpop.f32.mrb[0].mxu0
  %v295 = vadd.f32 %v61, %v294
  %v296 = vpop.f32.mrb[0].mxu0
  %v297 = vpop.f32.mrb[0].mxu0
  %v298 = vadd.f32 %v61, %v297
  %v299 = vpop.f32.mrb[0].mxu0
  %300 = vmatprep.mubr.bf16.mxu0 0
  %301 = vmatmul.mubr.bf16.gmra.mrb[0].mxu0 %v170
  %v302 = vpop.f32.mrb[0].mxu0
  %v303 = vadd.f32 %v61, %v302
  %v304 = vpop.f32.mrb[0].mxu0
  %v305 = vpop.f32.mrb[0].mxu0
  %v306 = vpop.f32.mrb[0].mxu0
  %307 = vdwg.mxu0
  %v308 = vmax.f32 %v207, 0.0
  %v309 = vmax.f32 %v210, 0.0
  %v310 = vmax.f32 %v215, 0.0
  %v311 = vmax.f32 %v218, 0.0
  %v312 = vmax.f32 %v223, 0.0
  %v313 = vmax.f32 %v226, 0.0
  %v314 = vmax.f32 %v231, 0.0
  %v315 = vmax.f32 %v234, 0.0
  %v316 = vmax.f32 %v239, 0.0
  %v317 = vmax.f32 %v242, 0.0
  %v318 = vmax.f32 %v247, 0.0
  %v319 = vmax.f32 %v250, 0.0
  %v320 = vmax.f32 %v255, 0.0
  %v321 = vmax.f32 %v258, 0.0
  %v322 = vmax.f32 %v263, 0.0
  %v323 = vmax.f32 %v266, 0.0
  %v324 = vmax.f32 %v271, 0.0
  %v325 = vmax.f32 %v274, 0.0
  %v326 = vmax.f32 %v279, 0.0
  %v327 = vmax.f32 %v282, 0.0
  %v328 = vmax.f32 %v287, 0.0
  %v329 = vmax.f32 %v290, 0.0
  %v330 = vmax.f32 %v295, 0.0
  %v331 = vmax.f32 %v298, 0.0
  %v332 = vmax.f32 %v303, 0.0
  %v333 = vpack.c.bf16 %v309, %v308
  %v334 = vpack.c.bf16 %v311, %v310
  %v335 = vpack.c.bf16 %v313, %v312
  %v336 = vpack.c.bf16 %v315, %v314
  %v337 = vpack.c.bf16 %v317, %v316
  %v338 = vpack.c.bf16 %v319, %v318
  %v339 = vpack.c.bf16 %v321, %v320
  %v340 = vpack.c.bf16 %v323, %v322
  %v341 = vpack.c.bf16 %v325, %v324
  %v342 = vpack.c.bf16 %v327, %v326
  %v343 = vpack.c.bf16 %v329, %v328
  %v344 = vpack.c.bf16 %v331, %v330
  %v345 = vpack.c.bf16 %v332, %v332
  %v346 = vld [vmem:[%s3] sm:$0xf]
  %v347 = vld [vmem:[%s3 + $0x4] sm:$0xf]
  %v348 = vld [vmem:[%s3 + $0x8] sm:$0xf]
  %v349 = vld [vmem:[%s3 + $0xc] sm:$0xf]
  %v350 = vld [vmem:[%s3 + $0x10] sm:$0xf]
  %v351 = vld [vmem:[%s3 + $0x14] sm:$0xf]
  %v352 = vld [vmem:[%s3 + $0x18] sm:$0xf]
  %v353 = vld [vmem:[%s3 + $0x1c] sm:$0xf]
  %v354 = vld [vmem:[%s3 + $0x20] sm:$0xf]
  %v355 = vld [vmem:[%s3 + $0x24] sm:$0xf]
  %v356 = vld [vmem:[%s3 + $0x28] sm:$0xf]
  %v357 = vld [vmem:[%s3 + $0x2c] sm:$0xf]
  %v358 = vld [vmem:[%s3 + $0x30] sm:$0xf]
  %v359 = vld [vmem:[%s3 + $0x34] sm:$0xf]
  %v360 = vld [vmem:[%s3 + $0x38] sm:$0xf]
  %v361 = vld [vmem:[%s3 + $0x3c] sm:$0xf]
  %v363 = vlaneseq
  %v364 = vshrl.u32 %v363, 7
  %v365 = vsub.s32 0, %v364
  %v366 = vrot.slane %v28, %v365
  %v384 = vunpack.c.l.b16 %v346
  %v385 = vunpack.c.l.b16 %v347
  %v386 = vunpack.c.l.b16 %v348
  %v387 = vunpack.c.l.b16 %v349
  %v388 = vunpack.c.l.b16 %v350
  %v389 = vunpack.c.l.b16 %v351
  %v390 = vunpack.c.l.b16 %v352
  %v391 = vunpack.c.l.b16 %v353
  %v392 = vunpack.c.l.b16 %v354
  %v393 = vunpack.c.l.b16 %v355
  %v394 = vunpack.c.l.b16 %v356
  %v395 = vunpack.c.l.b16 %v357
  %v396 = vunpack.c.l.b16 %v358
  %v397 = vunpack.c.l.b16 %v359
  %v398 = vunpack.c.l.b16 %v360
  %v399 = vunpack.c.l.b16 %v361
  %v400 = vpack.c.b16 %v385, %v384
  %v401 = vpack.c.b16 %v387, %v386
  %v402 = vpack.c.b16 %v389, %v388
  %v403 = vpack.c.b16 %v391, %v390
  %v404 = vpack.c.b16 %v393, %v392
  %v405 = vpack.c.b16 %v395, %v394
  %v406 = vpack.c.b16 %v397, %v396
  %v407 = vpack.c.b16 %v399, %v398
  %416 = vmatprep.subr.bf16.mxu0 0
  %417 = vmatpush1.bf16.msra.mxu0 %v400
  %418 = vmatprep.subr.bf16.mxu0 0
  %419 = vmatpush1.bf16.msra.mxu0 %v401
  %420 = vmatprep.subr.bf16.mxu0 0
  %421 = vmatpush1.bf16.msra.mxu0 %v402
  %422 = vmatprep.subr.bf16.mxu0 0
  %423 = vmatpush1.bf16.msra.mxu0 %v403
  %424 = vmatprep.subr.bf16.mxu0 0
  %425 = vmatpush1.bf16.msra.mxu0 %v404
  %426 = vmatprep.subr.bf16.mxu0 0
  %427 = vmatpush1.bf16.msra.mxu0 %v405
  %428 = vmatprep.subr.bf16.mxu0 0
  %429 = vmatpush1.bf16.msra.mxu0 %v406
  %430 = vmatprep.subr.bf16.mxu0 0
  %431 = vmatpush1.bf16.msra.mxu0 %v407
  %432 = vmatprep.subr.bf16.mxu0 0
  %433 = vmatpush1.bf16.msra.mxu0 0
  %434 = vmatprep.subr.bf16.mxu0 0
  %435 = vmatpush1.bf16.msra.mxu0 0
  %436 = vmatprep.subr.bf16.mxu0 0
  %437 = vmatpush1.bf16.msra.mxu0 0
  %438 = vmatprep.subr.bf16.mxu0 0
  %439 = vmatpush1.bf16.msra.mxu0 0
  %440 = vmatprep.subr.bf16.mxu0 0
  %441 = vmatpush1.bf16.msra.mxu0 0
  %442 = vmatprep.subr.bf16.mxu0 0
  %443 = vmatpush1.bf16.msra.mxu0 0
  %444 = vmatprep.subr.bf16.mxu0 0
  %445 = vmatpush1.bf16.msra.mxu0 0
  %446 = vmatprep.subr.bf16.mxu0 0
  %447 = vmatpush1.bf16.msra.mxu0 0
  %448 = vmatprep.mubr.bf16.mxu0 0
  %449 = vmatmul.mubr.bf16.gmra.mrb[0].mxu0 %v333
  %v450 = vpop.f32.mrb[0].mxu0
  %v451 = vadd.f32 %v366, %v450
  %v452 = vpop.f32.mrb[0].mxu0
  %v453 = vpop.f32.mrb[0].mxu0
  %v454 = vadd.f32 %v366, %v453
  %v455 = vpop.f32.mrb[0].mxu0
  %456 = vmatprep.mubr.bf16.mxu0 0
  %457 = vmatmul.mubr.bf16.gmra.mrb[0].mxu0 %v334
  %v458 = vpop.f32.mrb[0].mxu0
  %v459 = vadd.f32 %v366, %v458
  %v460 = vpop.f32.mrb[0].mxu0
  %v461 = vpop.f32.mrb[0].mxu0
  %v462 = vadd.f32 %v366, %v461
  %v463 = vpop.f32.mrb[0].mxu0
  %464 = vmatprep.mubr.bf16.mxu0 0
  %465 = vmatmul.mubr.bf16.gmra.mrb[0].mxu0 %v335
  %v466 = vpop.f32.mrb[0].mxu0
  %v467 = vadd.f32 %v366, %v466
  %v468 = vpop.f32.mrb[0].mxu0
  %v469 = vpop.f32.mrb[0].mxu0
  %v470 = vadd.f32 %v366, %v469
  %v471 = vpop.f32.mrb[0].mxu0
  %472 = vmatprep.mubr.bf16.mxu0 0
  %473 = vmatmul.mubr.bf16.gmra.mrb[0].mxu0 %v336
  %v474 = vpop.f32.mrb[0].mxu0
  %v475 = vadd.f32 %v366, %v474
  %v476 = vpop.f32.mrb[0].mxu0
  %v477 = vpop.f32.mrb[0].mxu0
  %v478 = vadd.f32 %v366, %v477
  %v479 = vpop.f32.mrb[0].mxu0
  %480 = vmatprep.mubr.bf16.mxu0 0
  %481 = vmatmul.mubr.bf16.gmra.mrb[0].mxu0 %v337
  %v482 = vpop.f32.mrb[0].mxu0
  %v483 = vadd.f32 %v366, %v482
  %v484 = vpop.f32.mrb[0].mxu0
  %v485 = vpop.f32.mrb[0].mxu0
  %v486 = vadd.f32 %v366, %v485
  %v487 = vpop.f32.mrb[0].mxu0
  %488 = vmatprep.mubr.bf16.mxu0 0
  %489 = vmatmul.mubr.bf16.gmra.mrb[0].mxu0 %v338
  %v490 = vpop.f32.mrb[0].mxu0
  %v491 = vadd.f32 %v366, %v490
  %v492 = vpop.f32.mrb[0].mxu0
  %v493 = vpop.f32.mrb[0].mxu0
  %v494 = vadd.f32 %v366, %v493
  %v495 = vpop.f32.mrb[0].mxu0
  %496 = vmatprep.mubr.bf16.mxu0 0
  %497 = vmatmul.mubr.bf16.gmra.mrb[0].mxu0 %v339
  %v498 = vpop.f32.mrb[0].mxu0
  %v499 = vadd.f32 %v366, %v498
  %v500 = vpop.f32.mrb[0].mxu0
  %v501 = vpop.f32.mrb[0].mxu0
  %v502 = vadd.f32 %v366, %v501
  %v503 = vpop.f32.mrb[0].mxu0
  %504 = vmatprep.mubr.bf16.mxu0 0
  %505 = vmatmul.mubr.bf16.gmra.mrb[0].mxu0 %v340
  %v506 = vpop.f32.mrb[0].mxu0
  %v507 = vadd.f32 %v366, %v506
  %v508 = vpop.f32.mrb[0].mxu0
  %v509 = vpop.f32.mrb[0].mxu0
  %v510 = vadd.f32 %v366, %v509
  %v511 = vpop.f32.mrb[0].mxu0
  %512 = vmatprep.mubr.bf16.mxu0 0
  %513 = vmatmul.mubr.bf16.gmra.mrb[0].mxu0 %v341
  %v514 = vpop.f32.mrb[0].mxu0
  %v515 = vadd.f32 %v366, %v514
  %v516 = vpop.f32.mrb[0].mxu0
  %v517 = vpop.f32.mrb[0].mxu0
  %v518 = vadd.f32 %v366, %v517
  %v519 = vpop.f32.mrb[0].mxu0
  %520 = vmatprep.mubr.bf16.mxu0 0
  %521 = vmatmul.mubr.bf16.gmra.mrb[0].mxu0 %v342
  %v522 = vpop.f32.mrb[0].mxu0
  %v523 = vadd.f32 %v366, %v522
  %v524 = vpop.f32.mrb[0].mxu0
  %v525 = vpop.f32.mrb[0].mxu0
  %v526 = vadd.f32 %v366, %v525
  %v527 = vpop.f32.mrb[0].mxu0
  %528 = vmatprep.mubr.bf16.mxu0 0
  %529 = vmatmul.mubr.bf16.gmra.mrb[0].mxu0 %v343
  %v530 = vpop.f32.mrb[0].mxu0
  %v531 = vadd.f32 %v366, %v530
  %v532 = vpop.f32.mrb[0].mxu0
  %v533 = vpop.f32.mrb[0].mxu0
  %v534 = vadd.f32 %v366, %v533
  %v535 = vpop.f32.mrb[0].mxu0
  %536 = vmatprep.mubr.bf16.mxu0 0
  %537 = vmatmul.mubr.bf16.gmra.mrb[0].mxu0 %v344
  %v538 = vpop.f32.mrb[0].mxu0
  %v539 = vadd.f32 %v366, %v538
  %v540 = vpop.f32.mrb[0].mxu0
  %v541 = vpop.f32.mrb[0].mxu0
  %v542 = vadd.f32 %v366, %v541
  %v543 = vpop.f32.mrb[0].mxu0
  %544 = vmatprep.mubr.bf16.mxu0 0
  %545 = vmatmul.mubr.bf16.gmra.mrb[0].mxu0 %v345
  %v546 = vpop.f32.mrb[0].mxu0
  %v547 = vadd.f32 %v366, %v546
  %v548 = vpop.f32.mrb[0].mxu0
  %v549 = vpop.f32.mrb[0].mxu0
  %v550 = vpop.f32.mrb[0].mxu0
  %551 = vdwg.mxu0
  %v552 = vmax.f32 %v451, 0.0
  %v553 = vmax.f32 %v454, 0.0
  %v554 = vmax.f32 %v459, 0.0
  %v555 = vmax.f32 %v462, 0.0
  %v556 = vmax.f32 %v467, 0.0
  %v557 = vmax.f32 %v470, 0.0
  %v558 = vmax.f32 %v475, 0.0
  %v559 = vmax.f32 %v478, 0.0
  %v560 = vmax.f32 %v483, 0.0
  %v561 = vmax.f32 %v486, 0.0
  %v562 = vmax.f32 %v491, 0.0
  %v563 = vmax.f32 %v494, 0.0
  %v564 = vmax.f32 %v499, 0.0
  %v565 = vmax.f32 %v502, 0.0
  %v566 = vmax.f32 %v507, 0.0
  %v567 = vmax.f32 %v510, 0.0
  %v568 = vmax.f32 %v515, 0.0
  %v569 = vmax.f32 %v518, 0.0
  %v570 = vmax.f32 %v523, 0.0
  %v571 = vmax.f32 %v526, 0.0
  %v572 = vmax.f32 %v531, 0.0
  %v573 = vmax.f32 %v534, 0.0
  %v574 = vmax.f32 %v539, 0.0
  %v575 = vmax.f32 %v542, 0.0
  %v576 = vmax.f32 %v547, 0.0
  %v577 = vpack.c.bf16 %v553, %v552
  %v578 = vpack.c.bf16 %v555, %v554
  %v579 = vpack.c.bf16 %v557, %v556
  %v580 = vpack.c.bf16 %v559, %v558
  %v581 = vpack.c.bf16 %v561, %v560
  %v582 = vpack.c.bf16 %v563, %v562
  %v583 = vpack.c.bf16 %v565, %v564
  %v584 = vpack.c.bf16 %v567, %v566
  %v585 = vpack.c.bf16 %v569, %v568
  %v586 = vpack.c.bf16 %v571, %v570
  %v587 = vpack.c.bf16 %v573, %v572
  %v588 = vpack.c.bf16 %v575, %v574
  %v589 = vpack.c.bf16 %v576, %v576
  %v590 = vld [vmem:[%s5] sm:$0xf]
  %v591 = vld [vmem:[%s5 + $0x4] sm:$0xf]
  %v592 = vld [vmem:[%s5 + $0x8] sm:$0xf]
  %v593 = vld [vmem:[%s5 + $0xc] sm:$0xf]
  %v594 = vld [vmem:[%s5 + $0x10] sm:$0xf]
  %v595 = vld [vmem:[%s5 + $0x14] sm:$0xf]
  %v596 = vld [vmem:[%s5 + $0x18] sm:$0xf]
  %v597 = vld [vmem:[%s5 + $0x1c] sm:$0xf]
  %v598 = vld [vmem:[%s5 + $0x20] sm:$0xf]
  %v599 = vld [vmem:[%s5 + $0x24] sm:$0xf]
  %v600 = vld [vmem:[%s5 + $0x28] sm:$0xf]
  %v601 = vld [vmem:[%s5 + $0x2c] sm:$0xf]
  %v602 = vld [vmem:[%s5 + $0x30] sm:$0xf]
  %v603 = vld [vmem:[%s5 + $0x34] sm:$0xf]
  %v604 = vld [vmem:[%s5 + $0x38] sm:$0xf]
  %v605 = vld [vmem:[%s5 + $0x3c] sm:$0xf]
  %v607 = vlaneseq
  %v608 = vshrl.u32 %v607, 7
  %v609 = vsub.s32 0, %v608
  %v610 = vrot.slane %v29, %v609
  %v628 = vunpack.c.l.b16 %v590
  %v629 = vunpack.c.l.b16 %v591
  %v630 = vunpack.c.l.b16 %v592
  %v631 = vunpack.c.l.b16 %v593
  %v632 = vunpack.c.l.b16 %v594
  %v633 = vunpack.c.l.b16 %v595
  %v634 = vunpack.c.l.b16 %v596
  %v635 = vunpack.c.l.b16 %v597
  %v636 = vunpack.c.l.b16 %v598
  %v637 = vunpack.c.l.b16 %v599
  %v638 = vunpack.c.l.b16 %v600
  %v639 = vunpack.c.l.b16 %v601
  %v640 = vunpack.c.l.b16 %v602
  %v641 = vunpack.c.l.b16 %v603
  %v642 = vunpack.c.l.b16 %v604
  %v643 = vunpack.c.l.b16 %v605
  %v644 = vpack.c.b16 %v629, %v628
  %v645 = vpack.c.b16 %v631, %v630
  %v646 = vpack.c.b16 %v633, %v632
  %v647 = vpack.c.b16 %v635, %v634
  %v648 = vpack.c.b16 %v637, %v636
  %v649 = vpack.c.b16 %v639, %v638
  %v650 = vpack.c.b16 %v641, %v640
  %v651 = vpack.c.b16 %v643, %v642
  %660 = vmatprep.subr.bf16.mxu0 0
  %661 = vmatpush1.bf16.msra.mxu0 %v644
  %662 = vmatprep.subr.bf16.mxu0 0
  %663 = vmatpush1.bf16.msra.mxu0 %v645
  %664 = vmatprep.subr.bf16.mxu0 0
  %665 = vmatpush1.bf16.msra.mxu0 %v646
  %666 = vmatprep.subr.bf16.mxu0 0
  %667 = vmatpush1.bf16.msra.mxu0 %v647
  %668 = vmatprep.subr.bf16.mxu0 0
  %669 = vmatpush1.bf16.msra.mxu0 %v648
  %670 = vmatprep.subr.bf16.mxu0 0
  %671 = vmatpush1.bf16.msra.mxu0 %v649
  %672 = vmatprep.subr.bf16.mxu0 0
  %673 = vmatpush1.bf16.msra.mxu0 %v650
  %674 = vmatprep.subr.bf16.mxu0 0
  %675 = vmatpush1.bf16.msra.mxu0 %v651
  %676 = vmatprep.subr.bf16.mxu0 0
  %677 = vmatpush1.bf16.msra.mxu0 0
  %678 = vmatprep.subr.bf16.mxu0 0
  %679 = vmatpush1.bf16.msra.mxu0 0
  %680 = vmatprep.subr.bf16.mxu0 0
  %681 = vmatpush1.bf16.msra.mxu0 0
  %682 = vmatprep.subr.bf16.mxu0 0
  %683 = vmatpush1.bf16.msra.mxu0 0
  %684 = vmatprep.subr.bf16.mxu0 0
  %685 = vmatpush1.bf16.msra.mxu0 0
  %686 = vmatprep.subr.bf16.mxu0 0
  %687 = vmatpush1.bf16.msra.mxu0 0
  %688 = vmatprep.subr.bf16.mxu0 0
  %689 = vmatpush1.bf16.msra.mxu0 0
  %690 = vmatprep.subr.bf16.mxu0 0
  %691 = vmatpush1.bf16.msra.mxu0 0
  %692 = vmatprep.mubr.bf16.mxu0 0
  %693 = vmatmul.mubr.bf16.gmra.mrb[0].mxu0 %v577
  %v694 = vpop.f32.mrb[0].mxu0
  %v695 = vadd.f32 %v610, %v694
  %v696 = vpop.f32.mrb[0].mxu0
  %v697 = vpop.f32.mrb[0].mxu0
  %v698 = vadd.f32 %v610, %v697
  %v699 = vpop.f32.mrb[0].mxu0
  %700 = vmatprep.mubr.bf16.mxu0 0
  %701 = vmatmul.mubr.bf16.gmra.mrb[0].mxu0 %v578
  %v702 = vpop.f32.mrb[0].mxu0
  %v703 = vadd.f32 %v610, %v702
  %v704 = vpop.f32.mrb[0].mxu0
  %v705 = vpop.f32.mrb[0].mxu0
  %v706 = vadd.f32 %v610, %v705
  %v707 = vpop.f32.mrb[0].mxu0
  %708 = vmatprep.mubr.bf16.mxu0 0
  %709 = vmatmul.mubr.bf16.gmra.mrb[0].mxu0 %v579
  %v710 = vpop.f32.mrb[0].mxu0
  %v711 = vadd.f32 %v610, %v710
  %v712 = vpop.f32.mrb[0].mxu0
  %v713 = vpop.f32.mrb[0].mxu0
  %v714 = vadd.f32 %v610, %v713
  %v715 = vpop.f32.mrb[0].mxu0
  %716 = vmatprep.mubr.bf16.mxu0 0
  %717 = vmatmul.mubr.bf16.gmra.mrb[0].mxu0 %v580
  %v718 = vpop.f32.mrb[0].mxu0
  %v719 = vadd.f32 %v610, %v718
  %v720 = vpop.f32.mrb[0].mxu0
  %v721 = vpop.f32.mrb[0].mxu0
  %v722 = vadd.f32 %v610, %v721
  %v723 = vpop.f32.mrb[0].mxu0
  %724 = vmatprep.mubr.bf16.mxu0 0
  %725 = vmatmul.mubr.bf16.gmra.mrb[0].mxu0 %v581
  %v726 = vpop.f32.mrb[0].mxu0
  %v727 = vadd.f32 %v610, %v726
  %v728 = vpop.f32.mrb[0].mxu0
  %v729 = vpop.f32.mrb[0].mxu0
  %v730 = vadd.f32 %v610, %v729
  %v731 = vpop.f32.mrb[0].mxu0
  %732 = vmatprep.mubr.bf16.mxu0 0
  %733 = vmatmul.mubr.bf16.gmra.mrb[0].mxu0 %v582
  %v734 = vpop.f32.mrb[0].mxu0
  %v735 = vadd.f32 %v610, %v734
  %v736 = vpop.f32.mrb[0].mxu0
  %v737 = vpop.f32.mrb[0].mxu0
  %v738 = vadd.f32 %v610, %v737
  %v739 = vpop.f32.mrb[0].mxu0
  %740 = vmatprep.mubr.bf16.mxu0 0
  %741 = vmatmul.mubr.bf16.gmra.mrb[0].mxu0 %v583
  %v742 = vpop.f32.mrb[0].mxu0
  %v743 = vadd.f32 %v610, %v742
  %v744 = vpop.f32.mrb[0].mxu0
  %v745 = vpop.f32.mrb[0].mxu0
  %v746 = vadd.f32 %v610, %v745
  %v747 = vpop.f32.mrb[0].mxu0
  %748 = vmatprep.mubr.bf16.mxu0 0
  %749 = vmatmul.mubr.bf16.gmra.mrb[0].mxu0 %v584
  %v750 = vpop.f32.mrb[0].mxu0
  %v751 = vadd.f32 %v610, %v750
  %v752 = vpop.f32.mrb[0].mxu0
  %v753 = vpop.f32.mrb[0].mxu0
  %v754 = vadd.f32 %v610, %v753
  %v755 = vpop.f32.mrb[0].mxu0
  %756 = vmatprep.mubr.bf16.mxu0 0
  %757 = vmatmul.mubr.bf16.gmra.mrb[0].mxu0 %v585
  %v758 = vpop.f32.mrb[0].mxu0
  %v759 = vadd.f32 %v610, %v758
  %v760 = vpop.f32.mrb[0].mxu0
  %v761 = vpop.f32.mrb[0].mxu0
  %v762 = vadd.f32 %v610, %v761
  %v763 = vpop.f32.mrb[0].mxu0
  %764 = vmatprep.mubr.bf16.mxu0 0
  %765 = vmatmul.mubr.bf16.gmra.mrb[0].mxu0 %v586
  %v766 = vpop.f32.mrb[0].mxu0
  %v767 = vadd.f32 %v610, %v766
  %v768 = vpop.f32.mrb[0].mxu0
  %v769 = vpop.f32.mrb[0].mxu0
  %v770 = vadd.f32 %v610, %v769
  %v771 = vpop.f32.mrb[0].mxu0
  %772 = vmatprep.mubr.bf16.mxu0 0
  %773 = vmatmul.mubr.bf16.gmra.mrb[0].mxu0 %v587
  %v774 = vpop.f32.mrb[0].mxu0
  %v775 = vadd.f32 %v610, %v774
  %v776 = vpop.f32.mrb[0].mxu0
  %v777 = vpop.f32.mrb[0].mxu0
  %v778 = vadd.f32 %v610, %v777
  %v779 = vpop.f32.mrb[0].mxu0
  %780 = vmatprep.mubr.bf16.mxu0 0
  %781 = vmatmul.mubr.bf16.gmra.mrb[0].mxu0 %v588
  %v782 = vpop.f32.mrb[0].mxu0
  %v783 = vadd.f32 %v610, %v782
  %v784 = vpop.f32.mrb[0].mxu0
  %v785 = vpop.f32.mrb[0].mxu0
  %v786 = vadd.f32 %v610, %v785
  %v787 = vpop.f32.mrb[0].mxu0
  %788 = vmatprep.mubr.bf16.mxu0 0
  %789 = vmatmul.mubr.bf16.gmra.mrb[0].mxu0 %v589
  %v790 = vpop.f32.mrb[0].mxu0
  %v791 = vadd.f32 %v610, %v790
  %v792 = vpop.f32.mrb[0].mxu0
  %v793 = vpop.f32.mrb[0].mxu0
  %v794 = vpop.f32.mrb[0].mxu0
  %795 = vdwg.mxu0
  %796 = vst [vmem:[%s7] sm:$0xff] %v695
  %797 = vst [vmem:[%s7 + $0x8] sm:$0xff] %v698
  %798 = vst [vmem:[%s7 + $0x10] sm:$0xff] %v703
  %799 = vst [vmem:[%s7 + $0x18] sm:$0xff] %v706
  %800 = vst [vmem:[%s7 + $0x20] sm:$0xff] %v711
  %801 = vst [vmem:[%s7 + $0x28] sm:$0xff] %v714
  %802 = vst [vmem:[%s7 + $0x30] sm:$0xff] %v719
  %803 = vst [vmem:[%s7 + $0x38] sm:$0xff] %v722
  %804 = vst [vmem:[%s7 + $0x40] sm:$0xff] %v727
  %805 = vst [vmem:[%s7 + $0x48] sm:$0xff] %v730
  %806 = vst [vmem:[%s7 + $0x50] sm:$0xff] %v735
  %807 = vst [vmem:[%s7 + $0x58] sm:$0xff] %v738
  %808 = vst [vmem:[%s7 + $0x60] sm:$0xff] %v743
  %809 = vst [vmem:[%s7 + $0x68] sm:$0xff] %v746
  %810 = vst [vmem:[%s7 + $0x70] sm:$0xff] %v751
  %811 = vst [vmem:[%s7 + $0x78] sm:$0xff] %v754
  %812 = vst [vmem:[%s7 + $0x80] sm:$0xff] %v759
  %813 = vst [vmem:[%s7 + $0x88] sm:$0xff] %v762
  %814 = vst [vmem:[%s7 + $0x90] sm:$0xff] %v767
  %815 = vst [vmem:[%s7 + $0x98] sm:$0xff] %v770
  %816 = vst [vmem:[%s7 + $0xa0] sm:$0xff] %v775
  %817 = vst [vmem:[%s7 + $0xa8] sm:$0xff] %v778
  %818 = vst [vmem:[%s7 + $0xb0] sm:$0xff] %v783
  %819 = vst [vmem:[%s7 + $0xb8] sm:$0xff] %v786
  %820 = vst [vmem:[%s7 + $0xc0] sm:$0xff] %v791
  // Predicated region
  $region30: #{dqn_forward.1} parent=0 // pred_check
    _
  $region31: #{dqn_forward.1} parent=0 // pred_check_branch
    %822 = sbr.rel (0) target = $region33
  $region32: #{dqn_forward.1} parent=0 // pred_region
    _
  $region33: #{dqn_forward.1} parent=0 // pred_fallthru
    _
  // Predicated region
  $region34: #{dqn_forward.1} parent=0 // pred_check
    _
  $region35: #{dqn_forward.1} parent=0 // pred_check_branch
    %824 = sbr.rel (0) target = $region37
  $region36: #{dqn_forward.1} parent=0 // pred_region
    _
  $region37: #{dqn_forward.1} parent=0 // pred_fallthru
    _

</llo_original>
